<compile_context>
chip_gen: v7x
topology: tpu7x:2x2x1
jax: 0.10.0
libtpu: 0.0.40
codegen_flags: <defaults>
</compile_context>

<pallas_src>
import functools

import jax
import jax.numpy as jnp
from jax import lax
from jax.experimental import pallas as pl
from jax.experimental.pallas import tpu as pltpu


def _round_up(x, m):
    return (x + m - 1) // m * m


# ----------------------------------------------------------------------------
# shared in-kernel helpers
# ----------------------------------------------------------------------------
def _token_type_select(ttid_ref, tok_ref):
    """(ts, H) token-type embedding via T-1 VPU selects (T is tiny, usually 2)."""
    T = tok_ref.shape[0]
    tok_col = ttid_ref[0]                          # (ts, 1) int32, sublane-oriented
    sel = tok_ref[pl.ds(0, 1), :]                  # (1, H) -> broadcasts
    for tt in range(1, T):
        sel = jnp.where(tok_col == tt, tok_ref[pl.ds(tt, 1), :], sel)
    return sel                                     # (ts, H) (or (1, H) if T == 1)


def _layernorm_store(emb_f32, gamma_ref, beta_ref, out_ref, eps):
    mean = jnp.mean(emb_f32, axis=-1, keepdims=True)
    centered = emb_f32 - mean
    var = jnp.mean(centered * centered, axis=-1, keepdims=True)
    scale = lax.rsqrt(var + eps) * gamma_ref[...]          # fused LN scale
    out = centered * scale + beta_ref[...]
    out_ref[0, :, :] = out.astype(out_ref.dtype)


# ----------------------------------------------------------------------------
# path 1: HBM row-gather with cross-tile double buffering
# ----------------------------------------------------------------------------
def _nezha_gather_kernel(ids_smem,      # (B, S_pad) int32 — SMEM (scalar prefetch)
                         ttid_ref,      # (1, ts, 1) int32 — VMEM
                         word_hbm,      # (V, H)           — HBM (pl.ANY)
                         pos_ref,       # (S_pad, H)       — VMEM, resident
                         tok_ref,       # (T, H)           — VMEM
                         gamma_ref,     # (1, H) f32
                         beta_ref,      # (1, H) f32
                         out_ref,       # (1, ts, H)
                         word_buf,      # (2, ts, H) VMEM scratch (double buffer)
                         dma_sem,       # DMA semaphores, shape (2,)
                         *, eps, ts, unroll):
    b = pl.program_id(0)
    t = pl.program_id(1)
    nt = pl.num_programs(1)
    slot = t & 1

    def issue_tile(tile_idx, dst_slot):
        """Kick off the ts row-gather DMAs of `tile_idx` (this batch row)."""
        base = pl.multiple_of(tile_idx * ts, 8)

        @pl.loop(0, ts // unroll)
        def _issue(i):
            s0 = pl.multiple_of(i * unroll, unroll)
            for u in range(unroll):                 # unrolled descriptor pushes
                s = s0 + u
                row = ids_smem[b, base + s]
                pltpu.make_async_copy(
                    word_hbm.at[pl.ds(row, 1), :],
                    word_buf.at[dst_slot, pl.ds(s, 1), :],
                    dma_sem.at[dst_slot]).start()

    # -- 1) prime: the first tile of every batch row gathers itself ----------
    @pl.when(t == 0)
    def _():
        issue_tile(t, slot)            # here t == 0, slot == 0

    # -- 2) cross-tile double buffer: prefetch tile t+1 while computing t ----
    @pl.when(t + 1 < nt)
    def _():
        issue_tile(t + 1, 1 - slot)

    # -- 3) overlap with in-flight DMAs: position + token-type ---------------
    base = pl.multiple_of(t * ts, 8)
    rest = (pos_ref[pl.ds(base, ts), :].astype(jnp.float32)
            + _token_type_select(ttid_ref, tok_ref).astype(jnp.float32))

    # -- 4) ONE bulk wait: every row copy of this slot signals the same
    #       semaphore with identical byte counts, so a single (ts, H)-sized
    #       wait drains all ts of them. -------------------------------------
    pltpu.make_async_copy(word_hbm.at[pl.ds(0, ts), :],
                          word_buf.at[slot],
                          dma_sem.at[slot]).wait()

    # -- 5) sum + fused LayerNorm --------------------------------------------
    emb = word_buf[slot].astype(jnp.float32) + rest
    _layernorm_store(emb, gamma_ref, beta_ref, out_ref, eps)


# ----------------------------------------------------------------------------
# path 2: small-vocab fast path (word table VMEM-resident, one-hot MXU gather)
# ----------------------------------------------------------------------------
def _nezha_onehot_kernel(ids_ref,       # (1, ts, 1) int32
                         ttid_ref,      # (1, ts, 1) int32
                         word_ref,      # (V, H) VMEM resident
                         pos_ref,       # (S_pad, H) VMEM resident
                         tok_ref,       # (T, H)
                         gamma_ref,     # (1, H) f32
                         beta_ref,      # (1, H) f32
                         out_ref,       # (1, ts, H)
                         *, eps, ts):
    t = pl.program_id(1)
    V = word_ref.shape[0]
    base = pl.multiple_of(t * ts, 8)

    ids_col = ids_ref[0]                                          # (ts, 1) int32
    onehot = (lax.broadcasted_iota(jnp.int32, (ts, V), 1) == ids_col)
    words = jnp.dot(onehot.astype(jnp.float32),
                    word_ref[...].astype(jnp.float32),
                    preferred_element_type=jnp.float32)           # (ts, H) on MXU

    emb = (words
           + pos_ref[pl.ds(base, ts), :].astype(jnp.float32)
           + _token_type_select(ttid_ref, tok_ref).astype(jnp.float32))
    _layernorm_store(emb, gamma_ref, beta_ref, out_ref, eps)


# ----------------------------------------------------------------------------
# wrapper
# ----------------------------------------------------------------------------
def nezha_embeddings(input_ids, token_type_ids, word_table, pos_table,
                     tok_table, gamma, beta, *, eps=1e-12, seq_tile=256,
                     small_vocab_bytes=2 * 1024 * 1024, force_gather=False):
    B, S = input_ids.shape
    V, H = word_table.shape
    T = tok_table.shape[0]
    out_dtype = word_table.dtype
    itemsize = word_table.dtype.itemsize

    # ---- tiling: seq tile is a multiple of 8; pad S up to a tile multiple ----
    ts = min(max(int(seq_tile), 8), _round_up(S, 8))
    ts = _round_up(ts, 8)
    S_pad = _round_up(S, ts)
    num_tiles = S_pad // ts
    pad = S_pad - S

    input_ids = input_ids.astype(jnp.int32)
    token_type_ids = token_type_ids.astype(jnp.int32)
    pos_slice = pos_table[:S]                  # position_ids = arange(S) per row
    if pad:
        input_ids = jnp.pad(input_ids, ((0, 0), (0, pad)))          # pad id = 0
        token_type_ids = jnp.pad(token_type_ids, ((0, 0), (0, pad)))
        pos_slice = jnp.pad(pos_slice, ((0, pad), (0, 0)))

    ttid3 = token_type_ids.reshape(B, S_pad, 1)
    gamma2 = gamma.reshape(1, H).astype(jnp.float32)
    beta2 = beta.reshape(1, H).astype(jnp.float32)

    use_onehot = (not force_gather) and (V * H * itemsize <= small_vocab_bytes)

    # ---- explicit VMEM budget (review item: v7x has 64 MiB only) ------------
    resident_bytes = (S_pad * H + T * H + 2 * H) * itemsize
    tile_bytes = 4 * ts * H * itemsize + 4 * ts * 4 * 4
    table_bytes = (V * H if use_onehot else 2 * ts * H) * itemsize
    vmem_limit = int(min(max(2 * (resident_bytes + tile_bytes + table_bytes),
                             32 * 1024 * 1024),
                         64 * 1024 * 1024))

    if use_onehot:
        kernel = functools.partial(_nezha_onehot_kernel, eps=float(eps), ts=ts)
        ids3 = input_ids.reshape(B, S_pad, 1)
        out = pl.pallas_call(
            kernel,
            out_shape=jax.ShapeDtypeStruct((B, S_pad, H), out_dtype),
            grid_spec=pltpu.PrefetchScalarGridSpec(
                num_scalar_prefetch=0,
                grid=(B, num_tiles),
                in_specs=[
                    pl.BlockSpec((1, ts, 1), lambda b, t: (b, t, 0)),   # input ids
                    pl.BlockSpec((1, ts, 1), lambda b, t: (b, t, 0)),   # token-type ids
                    pl.BlockSpec((V, H), lambda b, t: (0, 0)),          # word table (VMEM)
                    pl.BlockSpec((S_pad, H), lambda b, t: (0, 0)),      # pos table, resident
                    pl.BlockSpec((T, H), lambda b, t: (0, 0)),          # token-type table
                    pl.BlockSpec((1, H), lambda b, t: (0, 0)),          # gamma
                    pl.BlockSpec((1, H), lambda b, t: (0, 0)),          # beta
                ],
                out_specs=pl.BlockSpec((1, ts, H), lambda b, t: (b, t, 0)),
            ),
            compiler_params=pltpu.CompilerParams(
                dimension_semantics=("parallel", "parallel"),
                vmem_limit_bytes=vmem_limit),
        )(ids3, ttid3, word_table, pos_slice, tok_table, gamma2, beta2)
    else:
        kernel = functools.partial(_nezha_gather_kernel, eps=float(eps), ts=ts,
                                   unroll=8)
        out = pl.pallas_call(
            kernel,
            out_shape=jax.ShapeDtypeStruct((B, S_pad, H), out_dtype),
            grid_spec=pltpu.PrefetchScalarGridSpec(
                num_scalar_prefetch=1,                                   # input_ids -> SMEM
                grid=(B, num_tiles),
                in_specs=[
                    pl.BlockSpec((1, ts, 1), lambda b, t, ids: (b, t, 0)),  # token-type ids
                    pl.BlockSpec(memory_space=pl.ANY),                      # word table stays in HBM
                    pl.BlockSpec((S_pad, H), lambda b, t, ids: (0, 0)),     # pos table, resident
                    pl.BlockSpec((T, H), lambda b, t, ids: (0, 0)),         # token-type table
                    pl.BlockSpec((1, H), lambda b, t, ids: (0, 0)),         # gamma
                    pl.BlockSpec((1, H), lambda b, t, ids: (0, 0)),         # beta
                ],
                out_specs=pl.BlockSpec((1, ts, H), lambda b, t, ids: (b, t, 0)),
                scratch_shapes=[
                    pltpu.VMEM((2, ts, H), out_dtype),      # cross-tile double buffer
                    pltpu.SemaphoreType.DMA((2,)),
                ],
            ),
            compiler_params=pltpu.CompilerParams(
                # seq axis MUST be "arbitrary": the cross-tile double buffer needs
                # consecutive tiles of a batch row on the same core; batch stays
                # "parallel" so megacore (v7x) can shard it.
                dimension_semantics=("parallel", "arbitrary"),
                vmem_limit_bytes=vmem_limit),
        )(input_ids, ttid3, word_table, pos_slice, tok_table, gamma2, beta2)

    return out[:, :S] if pad else out


# ----------------------------------------------------------------------------
# reference + demo
# ----------------------------------------------------------------------------
def _reference(input_ids, token_type_ids, word_table, pos_table, tok_table,
               gamma, beta, eps=1e-12):
    words = word_table[input_ids]                               # (B, S, H)
    pos = pos_table[jnp.arange(input_ids.shape[1])][None]       # (1, S, H)
    tok = tok_table[token_type_ids]                             # (B, S, H)
    emb = words + pos + tok
    mean = emb.mean(-1, keepdims=True)
    var = ((emb - mean) ** 2).mean(-1, keepdims=True)
    return (emb - mean) / jnp.sqrt(var + eps) * gamma + beta


if __name__ == "__main__":
    # Small config: vocab=64, max_pos=32, type_vocab=2, hidden=32, batch=2, seq=16.
    B, S, H = 2, 16, 32
    V, P, T = 64, 32, 2
    eps = 1e-12

    key = jax.random.PRNGKey(0)
    k_ids, k_tok, k_w, k_p, k_t = jax.random.split(key, 5)

    input_ids = jax.random.randint(k_ids, (B, S), 0, V, dtype=jnp.int32)
    token_type_ids = jax.random.randint(k_tok, (B, S), 0, T, dtype=jnp.int32)

    word_table = jax.random.normal(k_w, (V, H), dtype=jnp.float32) * 0.02
    word_table = word_table.at[0].set(0.0)              # padding_idx = 0
    pos_table = jax.random.normal(k_p, (P, H), dtype=jnp.float32) * 0.02
    tok_table = jax.random.normal(k_t, (T, H), dtype=jnp.float32) * 0.02
    gamma = jnp.ones((H,), jnp.float32)
    beta = jnp.zeros((H,), jnp.float32)

    ref = _reference(input_ids, token_type_ids, word_table, pos_table,
                     tok_table, gamma, beta, eps)

    # 1) small-vocab fast path (word table VMEM-resident, one-hot MXU gather)
    out_fast = nezha_embeddings(input_ids, token_type_ids, word_table,
                                pos_table, tok_table, gamma, beta, eps=eps)
    out_fast = jax.block_until_ready(out_fast)
    assert out_fast.shape == (B, S, H)
    assert jnp.allclose(out_fast, ref, atol=1e-5, rtol=1e-5), "one-hot path mismatch"

    # 2) HBM-gather path with cross-tile double buffering (2 seq tiles of 8)
    out_gather = nezha_embeddings(input_ids, token_type_ids, word_table,
                                  pos_table, tok_table, gamma, beta, eps=eps,
                                  seq_tile=8, force_gather=True)
    out_gather = jax.block_until_ready(out_gather)
    assert out_gather.shape == (B, S, H)
    assert jnp.allclose(out_gather, ref, atol=1e-5, rtol=1e-5), "gather path mismatch"

    # 3) ragged sequence length (exercises the pad-to-tile + trim path)
    S_odd = 13
    ref_odd = _reference(input_ids[:, :S_odd], token_type_ids[:, :S_odd],
                         word_table, pos_table, tok_table, gamma, beta, eps)
    out_odd = nezha_embeddings(input_ids[:, :S_odd], token_type_ids[:, :S_odd],
                               word_table, pos_table, tok_table, gamma, beta,
                               eps=eps, seq_tile=8, force_gather=True)
    out_odd = jax.block_until_ready(out_odd)
    assert out_odd.shape == (B, S_odd, H)
    assert jnp.allclose(out_odd, ref_odd, atol=1e-5, rtol=1e-5), "padded path mismatch"

    print("KERNEL_OK")
</pallas_src>

<mosaic_0001>
module attributes {stable_mosaic.version = 11 : i64} {
  func.func @_nezha_onehot_kernel(%arg0: i32, %arg1: i32, %arg2: memref<1x16x1xi32, #tpu.memory_space<vmem>>, %arg3: memref<1x16x1xi32, #tpu.memory_space<vmem>>, %arg4: memref<64x32xf32, #tpu.memory_space<vmem>>, %arg5: memref<16x32xf32, #tpu.memory_space<vmem>>, %arg6: memref<2x32xf32, #tpu.memory_space<vmem>>, %arg7: memref<1x32xf32, #tpu.memory_space<vmem>>, %arg8: memref<1x32xf32, #tpu.memory_space<vmem>>, %arg9: memref<1x16x32xf32, #tpu.memory_space<vmem>>) attributes {dimension_semantics = [#tpu.dimension_semantics<parallel>, #tpu.dimension_semantics<parallel>], iteration_bounds = array<i64: 2, 1>, scalar_prefetch = 0 : i64, scratch_operands = 0 : i64, tpu.core_type = #tpu.core_type<tc>, window_params = [{transform_indices = @transform_0, window_bounds = array<i64: 1, 16, 1>}, {transform_indices = @transform_1, window_bounds = array<i64: 1, 16, 1>}, {pipeline_mode = #tpu.pipeline_mode<synchronous>, transform_indices = @transform_2, window_bounds = array<i64: 64, 32>}, {pipeline_mode = #tpu.pipeline_mode<synchronous>, transform_indices = @transform_3, window_bounds = array<i64: 16, 32>}, {pipeline_mode = #tpu.pipeline_mode<synchronous>, transform_indices = @transform_4, window_bounds = array<i64: 2, 32>}, {pipeline_mode = #tpu.pipeline_mode<synchronous>, transform_indices = @transform_5, window_bounds = array<i64: 1, 32>}, {pipeline_mode = #tpu.pipeline_mode<synchronous>, transform_indices = @transform_6, window_bounds = array<i64: 1, 32>}, {transform_indices = @transform_7, window_bounds = array<i64: 1, 16, 32>}]} {
    %c16_i32 = arith.constant 16 : i32
    %0 = arith.muli %arg1, %c16_i32 : i32
    %1 = tpu.assume_multiple %0, 8 : i32
    %c0 = arith.constant 0 : index
    %c0_0 = arith.constant 0 : index
    %c0_1 = arith.constant 0 : index
    %2 = vector.load %arg2[%c0, %c0_0, %c0_1] : memref<1x16x1xi32, #tpu.memory_space<vmem>>, vector<1x16x1xi32>
    %3 = vector.shape_cast %2 : vector<1x16x1xi32> to vector<16x1xi32>
    %4 = tpu.iota {dimensions = array<i32: 1>} : vector<16x64xi32>
    %5 = vector.broadcast %3 : vector<16x1xi32> to vector<16x64xi32>
    %6 = arith.cmpi eq, %4, %5 : vector<16x64xi32>
    %7 = arith.extui %6 : vector<16x64xi1> to vector<16x64xi32>
    %8 = arith.sitofp %7 : vector<16x64xi32> to vector<16x64xf32>
    %c0_2 = arith.constant 0 : index
    %c0_3 = arith.constant 0 : index
    %9 = vector.load %arg4[%c0_2, %c0_3] : memref<64x32xf32, #tpu.memory_space<vmem>>, vector<64x32xf32>
    %cst = arith.constant dense<0.000000e+00> : vector<16x32xf32>
    %10 = tpu.matmul %8, %9, %cst {dimension_numbers = #tpu.dot_dimension_numbers<[1], [0], [0], [1], [0, 0, 1, 1], [], []>} : vector<16x64xf32>, vector<64x32xf32>, vector<16x32xf32> -> vector<16x32xf32>
    %11 = arith.index_cast %1 : i32 to index
    %c0_4 = arith.constant 0 : index
    %12 = vector.load %arg5[%11, %c0_4] : memref<16x32xf32, #tpu.memory_space<vmem>>, vector<16x32xf32>
    %13 = arith.addf %10, %12 : vector<16x32xf32>
    %c0_5 = arith.constant 0 : index
    %c0_6 = arith.constant 0 : index
    %c0_7 = arith.constant 0 : index
    %14 = vector.load %arg3[%c0_5, %c0_6, %c0_7] : memref<1x16x1xi32, #tpu.memory_space<vmem>>, vector<1x16x1xi32>
    %15 = vector.shape_cast %14 : vector<1x16x1xi32> to vector<16x1xi32>
    %c0_8 = arith.constant 0 : index
    %c0_9 = arith.constant 0 : index
    %16 = vector.load %arg6[%c0_8, %c0_9] : memref<2x32xf32, #tpu.memory_space<vmem>>, vector<1x32xf32>
    %c1_i32 = arith.constant 1 : i32
    %17 = vector.broadcast %c1_i32 : i32 to vector<16x1xi32>
    %18 = arith.cmpi eq, %15, %17 : vector<16x1xi32>
    %c1 = arith.constant 1 : index
    %c0_10 = arith.constant 0 : index
    %19 = vector.load %arg6[%c1, %c0_10] : memref<2x32xf32, #tpu.memory_space<vmem>>, vector<1x32xf32>
    %20 = vector.shape_cast %18 : vector<16x1xi1> to vector<16x1xi1>
    %21 = vector.broadcast %20 : vector<16x1xi1> to vector<16x32xi1>
    %22 = vector.shape_cast %19 : vector<1x32xf32> to vector<1x32xf32>
    %23 = vector.broadcast %22 : vector<1x32xf32> to vector<16x32xf32>
    %24 = vector.shape_cast %16 : vector<1x32xf32> to vector<1x32xf32>
    %25 = vector.broadcast %24 : vector<1x32xf32> to vector<16x32xf32>
    %26 = arith.select %21, %23, %25 : vector<16x32xi1>, vector<16x32xf32>
    %27 = arith.addf %13, %26 : vector<16x32xf32>
    %cst_11 = arith.constant dense<0.000000e+00> : vector<16xf32>
    %28 = vector.multi_reduction <add>, %27, %cst_11 [1] : vector<16x32xf32> to vector<16xf32>
    %29 = vector.shape_cast %28 : vector<16xf32> to vector<16x1xf32>
    %cst_12 = arith.constant 3.200000e+01 : f32
    %30 = vector.broadcast %cst_12 : f32 to vector<16x1xf32>
    %31 = arith.divf %29, %30 : vector<16x1xf32>
    %32 = vector.broadcast %31 : vector<16x1xf32> to vector<16x32xf32>
    %33 = arith.subf %27, %32 : vector<16x32xf32>
    %34 = arith.mulf %33, %33 : vector<16x32xf32>
    %cst_13 = arith.constant dense<0.000000e+00> : vector<16xf32>
    %35 = vector.multi_reduction <add>, %34, %cst_13 [1] : vector<16x32xf32> to vector<16xf32>
    %36 = vector.shape_cast %35 : vector<16xf32> to vector<16x1xf32>
    %cst_14 = arith.constant 3.200000e+01 : f32
    %37 = vector.broadcast %cst_14 : f32 to vector<16x1xf32>
    %38 = arith.divf %36, %37 : vector<16x1xf32>
    %cst_15 = arith.constant 9.99999996E-13 : f32
    %39 = vector.broadcast %cst_15 : f32 to vector<16x1xf32>
    %40 = arith.addf %38, %39 : vector<16x1xf32>
    %41 = math.rsqrt %40 : vector<16x1xf32>
    %c0_16 = arith.constant 0 : index
    %c0_17 = arith.constant 0 : index
    %42 = vector.load %arg7[%c0_16, %c0_17] : memref<1x32xf32, #tpu.memory_space<vmem>>, vector<1x32xf32>
    %43 = vector.broadcast %41 : vector<16x1xf32> to vector<16x32xf32>
    %44 = vector.broadcast %42 : vector<1x32xf32> to vector<16x32xf32>
    %45 = arith.mulf %43, %44 : vector<16x32xf32>
    %46 = arith.mulf %33, %45 : vector<16x32xf32>
    %c0_18 = arith.constant 0 : index
    %c0_19 = arith.constant 0 : index
    %47 = vector.load %arg8[%c0_18, %c0_19] : memref<1x32xf32, #tpu.memory_space<vmem>>, vector<1x32xf32>
    %48 = vector.broadcast %47 : vector<1x32xf32> to vector<16x32xf32>
    %49 = arith.addf %46, %48 : vector<16x32xf32>
    %c0_20 = arith.constant 0 : index
    %c0_21 = arith.constant 0 : index
    %c0_22 = arith.constant 0 : index
    %50 = vector.load %arg9[%c0_20, %c0_21, %c0_22] : memref<1x16x32xf32, #tpu.memory_space<vmem>>, vector<1x16x32xf32>
    %51 = vector.shape_cast %50 : vector<1x16x32xf32> to vector<16x32xf32>
    %52 = vector.shape_cast %49 : vector<16x32xf32> to vector<1x16x32xf32>
    tpu.vector_store %arg9[%c0_20, %c0_21, %c0_22], %52 {strides = array<i32>} : memref<1x16x32xf32, #tpu.memory_space<vmem>>, vector<1x16x32xf32>,
    return
  }
  func.func @transform_0(%arg0: i32, %arg1: i32) -> (i32, i32, i32) {
    %c0_i32 = arith.constant 0 : i32
    %c0_i32_0 = arith.constant 0 : i32
    return %arg0, %arg1, %c0_i32 : i32, i32, i32
  }
  func.func @transform_1(%arg0: i32, %arg1: i32) -> (i32, i32, i32) {
    %c0_i32 = arith.constant 0 : i32
    %c0_i32_0 = arith.constant 0 : i32
    return %arg0, %arg1, %c0_i32 : i32, i32, i32
  }
  func.func @transform_2(%arg0: i32, %arg1: i32) -> (i32, i32) {
    %c0_i32 = arith.constant 0 : i32
    %c0_i32_0 = arith.constant 0 : i32
    %c0_i32_1 = arith.constant 0 : i32
    return %c0_i32, %c0_i32_0 : i32, i32
  }
  func.func @transform_3(%arg0: i32, %arg1: i32) -> (i32, i32) {
    %c0_i32 = arith.constant 0 : i32
    %c0_i32_0 = arith.constant 0 : i32
    %c0_i32_1 = arith.constant 0 : i32
    return %c0_i32, %c0_i32_0 : i32, i32
  }
  func.func @transform_4(%arg0: i32, %arg1: i32) -> (i32, i32) {
    %c0_i32 = arith.constant 0 : i32
    %c0_i32_0 = arith.constant 0 : i32
    %c0_i32_1 = arith.constant 0 : i32
    return %c0_i32, %c0_i32_0 : i32, i32
  }
  func.func @transform_5(%arg0: i32, %arg1: i32) -> (i32, i32) {
    %c0_i32 = arith.constant 0 : i32
    %c0_i32_0 = arith.constant 0 : i32
    %c0_i32_1 = arith.constant 0 : i32
    return %c0_i32, %c0_i32_0 : i32, i32
  }
  func.func @transform_6(%arg0: i32, %arg1: i32) -> (i32, i32) {
    %c0_i32 = arith.constant 0 : i32
    %c0_i32_0 = arith.constant 0 : i32
    %c0_i32_1 = arith.constant 0 : i32
    return %c0_i32, %c0_i32_0 : i32, i32
  }
  func.func @transform_7(%arg0: i32, %arg1: i32) -> (i32, i32, i32) {
    %c0_i32 = arith.constant 0 : i32
    %c0_i32_0 = arith.constant 0 : i32
    return %arg0, %arg1, %c0_i32 : i32, i32, i32
  }
}

</mosaic_0001>

<llo_original>
// kernel: tpu_custom_call.1
$region0: #{tpu_custom_call.1}
  #allocation0 [shape = 'u32[]', space=smem, size = 0x4, offset = 0x4, fixed_abs, tag = 'smem constant byte address 0x4 - core index']
  #allocation1 [shape = 'u32[144,128]{1,0:T(1,128)}', space=vmem, size = 0x12000, scoped, tag = 'internal scratch']
  %s0 = inlined_call_operand.vmem [shape: s32[2,16,1], index: 0, kind: input, shape index: {}]
  %s1 = inlined_call_operand.vmem [shape: s32[2,16,1], index: 1, kind: input, shape index: {}]
  %s2 = inlined_call_operand.vmem [shape: f32[64,32], index: 2, kind: input, shape index: {}]
  %s3 = inlined_call_operand.vmem [shape: f32[16,32], index: 3, kind: input, shape index: {}]
  %s4 = inlined_call_operand.vmem [shape: f32[2,32], index: 4, kind: input, shape index: {}]
  %s5 = inlined_call_operand.vmem [shape: f32[1,32], index: 5, kind: input, shape index: {}]
  %s6 = inlined_call_operand.vmem [shape: f32[1,32], index: 6, kind: input, shape index: {}]
  %s7 = inlined_call_operand.hbm [shape: f32[2,16,32], index: 7, kind: output, shape index: {}]
  %s8 = sld [smem:[#allocation0]]
  $region61: #{tpu_custom_call.1} parent=0
    _
  %s10 = ssub.s32 1, %s8
  %s11 = scalar_select 0, %s10, %s8
  $region1: #{tpu_custom_call.1} parent=0
    #allocation2 [shape = 'u8[16384]{0}', space=vmem, size = 0x4000, scoped, tag = 'output window, operand 0']
    #allocation3 [shape = 's32[2]{0}', space=sflag, size = 0x8, scoped, tag = 'scoped memory for tpu_custom_call.1']
    %12 = vsyncpa [#allocation3], 0
    %s13 = scalar_lea.sflag [#allocation3], 1
    %14 = vsyncpa %s13, 0
    loop: start=0, step=1, limit=4
    $region2: #{tpu_custom_call.1} parent=1 // loop_pre_header
      _
    $region3: #{tpu_custom_call.1} parent=1 // loop_header
      %s16 = sphi 0, %s20
      %p17 = scmp.ge.s32.totalorder %s16, 4
      %s23 = sphi 0, %s35
      %s24 = sphi 0, %s31
      %s25 = sphi 0, %s23
      %s26 = sphi 0, %s24
      %s27 = sphi 0, %s25
      %s28 = sphi 0, %s26
      %s40 = sphi 0, %s42
      %s43 = sphi 0, %s40
      %s44 = sphi 0, %s43
      %s60 = sphi 0, %s44
      %s68 = sphi 0, %s70
      %s71 = sphi 0, %s68
      %s72 = sphi 0, %s71
      %s88 = sphi 0, %s72
      %s92 = sphi 0, %s92
      %s94 = sphi 0, %s92
      %s95 = sphi 0, %s94
      %s109 = sphi 0, %s95
      %s113 = sphi 0, %s113
      %s115 = sphi 0, %s113
      %s116 = sphi 0, %s115
      %s130 = sphi 0, %s116
      %s134 = sphi 0, %s134
      %s136 = sphi 0, %s134
      %s137 = sphi 0, %s136
      %s151 = sphi 0, %s137
      %s155 = sphi 0, %s155
      %s157 = sphi 0, %s155
      %s158 = sphi 0, %s157
      %s172 = sphi 0, %s158
      %s176 = sphi 0, %s176
      %s178 = sphi 0, %s176
      %s179 = sphi 0, %s178
      %s193 = sphi 0, %s179
      %s201 = sphi 0, %s203
      %s204 = sphi 0, %s201
      %s205 = sphi 0, %s204
      %s221 = sphi 0, %s205
    $region4: #{tpu_custom_call.1} parent=1 // loop_header_branch
      %19 = sbr.rel (%p17) target = $region8
    $region5: #{tpu_custom_call.1} parent=1 // loop_body
      %s21 = ssub.s32 %s16, 1
      %s22 = ssub.s32 %s16, 2
      %s29 = sadd.s32 1, %s24
      %p30 = scmp.ge.s32.totalorder %s29, 1
      %s31 = scalar_select %p30, 0, %s29
      %s32 = sadd.s32 1, %s23
      %s33 = scalar_select %p30, %s32, %s23
      %p34 = scmp.ge.s32.totalorder %s33, 2
      %s35 = scalar_select %p34, 0, %s33
      %s36 = ssub.s32 %s23, %s35
      %s37 = ssub.s32 %s24, %s31
      %s38 = sor.u32 %s36, %s37
      %p39 = scmp.eq.s32.totalorder %s38, 0
      %s41 = sadd.s32 %s40, 1
      %s42 = scalar_select %p39, %s40, %s41
      %p45 = pneg %p39
      %p46 = scmp.eq.s32.totalorder %s16, 1
      %p47 = por %p45, %p46
      %p48 = scmp.ne.s32.totalorder %s40, %s43
      %p49 = scmp.eq.s32.totalorder %s16, 0
      %p50 = por %p48, %p49
      %p51 = scmp.ne.s32.totalorder %s40, %s43
      %p52 = scmp.eq.s32.totalorder %s21, 1
      %p53 = por %p51, %p52
      %p54 = scmp.ne.s32.totalorder %s43, %s44
      %p55 = scmp.eq.s32.totalorder %s21, 0
      %p56 = por %p54, %p55
      %p57 = scmp.ne.s32.totalorder %s43, %s44
      %p58 = scmp.eq.s32.totalorder %s22, 1
      %p59 = por %p57, %p58
      %p61 = scmp.ne.s32.totalorder %s44, %s60
      %p62 = scmp.eq.s32.totalorder %s22, 0
      %p63 = por %p61, %p62
      %s64 = ssub.s32 %s23, %s35
      %s65 = ssub.s32 %s24, %s31
      %s66 = sor.u32 %s64, %s65
      %p67 = scmp.eq.s32.totalorder %s66, 0
      %s69 = sadd.s32 %s68, 1
      %s70 = scalar_select %p67, %s68, %s69
      %p73 = pneg %p67
      %p74 = scmp.eq.s32.totalorder %s16, 1
      %p75 = por %p73, %p74
      %p76 = scmp.ne.s32.totalorder %s68, %s71
      %p77 = scmp.eq.s32.totalorder %s16, 0
      %p78 = por %p76, %p77
      %p79 = scmp.ne.s32.totalorder %s68, %s71
      %p80 = scmp.eq.s32.totalorder %s21, 1
      %p81 = por %p79, %p80
      %p82 = scmp.ne.s32.totalorder %s71, %s72
      %p83 = scmp.eq.s32.totalorder %s21, 0
      %p84 = por %p82, %p83
      %p85 = scmp.ne.s32.totalorder %s71, %s72
      %p86 = scmp.eq.s32.totalorder %s22, 1
      %p87 = por %p85, %p86
      %p89 = scmp.ne.s32.totalorder %s72, %s88
      %p90 = scmp.eq.s32.totalorder %s22, 0
      %p91 = por %p89, %p90
      %s93 = sadd.s32 %s92, 1
      %p96 = scmp.eq.s32.totalorder %s16, 1
      %p97 = scmp.ne.s32.totalorder %s92, %s94
      %p98 = scmp.eq.s32.totalorder %s16, 0
      %p99 = por %p97, %p98
      %p100 = scmp.ne.s32.totalorder %s92, %s94
      %p101 = scmp.eq.s32.totalorder %s21, 1
      %p102 = por %p100, %p101
      %p103 = scmp.ne.s32.totalorder %s94, %s95
      %p104 = scmp.eq.s32.totalorder %s21, 0
      %p105 = por %p103, %p104
      %p106 = scmp.ne.s32.totalorder %s94, %s95
      %p107 = scmp.eq.s32.totalorder %s22, 1
      %p108 = por %p106, %p107
      %p110 = scmp.ne.s32.totalorder %s95, %s109
      %p111 = scmp.eq.s32.totalorder %s22, 0
      %p112 = por %p110, %p111
      %s114 = sadd.s32 %s113, 1
      %p117 = scmp.eq.s32.totalorder %s16, 1
      %p118 = scmp.ne.s32.totalorder %s113, %s115
      %p119 = scmp.eq.s32.totalorder %s16, 0
      %p120 = por %p118, %p119
      %p121 = scmp.ne.s32.totalorder %s113, %s115
      %p122 = scmp.eq.s32.totalorder %s21, 1
      %p123 = por %p121, %p122
      %p124 = scmp.ne.s32.totalorder %s115, %s116
      %p125 = scmp.eq.s32.totalorder %s21, 0
      %p126 = por %p124, %p125
      %p127 = scmp.ne.s32.totalorder %s115, %s116
      %p128 = scmp.eq.s32.totalorder %s22, 1
      %p129 = por %p127, %p128
      %p131 = scmp.ne.s32.totalorder %s116, %s130
      %p132 = scmp.eq.s32.totalorder %s22, 0
      %p133 = por %p131, %p132
      %s135 = sadd.s32 %s134, 1
      %p138 = scmp.eq.s32.totalorder %s16, 1
      %p139 = scmp.ne.s32.totalorder %s134, %s136
      %p140 = scmp.eq.s32.totalorder %s16, 0
      %p141 = por %p139, %p140
      %p142 = scmp.ne.s32.totalorder %s134, %s136
      %p143 = scmp.eq.s32.totalorder %s21, 1
      %p144 = por %p142, %p143
      %p145 = scmp.ne.s32.totalorder %s136, %s137
      %p146 = scmp.eq.s32.totalorder %s21, 0
      %p147 = por %p145, %p146
      %p148 = scmp.ne.s32.totalorder %s136, %s137
      %p149 = scmp.eq.s32.totalorder %s22, 1
      %p150 = por %p148, %p149
      %p152 = scmp.ne.s32.totalorder %s137, %s151
      %p153 = scmp.eq.s32.totalorder %s22, 0
      %p154 = por %p152, %p153
      %s156 = sadd.s32 %s155, 1
      %p159 = scmp.eq.s32.totalorder %s16, 1
      %p160 = scmp.ne.s32.totalorder %s155, %s157
      %p161 = scmp.eq.s32.totalorder %s16, 0
      %p162 = por %p160, %p161
      %p163 = scmp.ne.s32.totalorder %s155, %s157
      %p164 = scmp.eq.s32.totalorder %s21, 1
      %p165 = por %p163, %p164
      %p166 = scmp.ne.s32.totalorder %s157, %s158
      %p167 = scmp.eq.s32.totalorder %s21, 0
      %p168 = por %p166, %p167
      %p169 = scmp.ne.s32.totalorder %s157, %s158
      %p170 = scmp.eq.s32.totalorder %s22, 1
      %p171 = por %p169, %p170
      %p173 = scmp.ne.s32.totalorder %s158, %s172
      %p174 = scmp.eq.s32.totalorder %s22, 0
      %p175 = por %p173, %p174
      %s177 = sadd.s32 %s176, 1
      %p180 = scmp.eq.s32.totalorder %s16, 1
      %p181 = scmp.ne.s32.totalorder %s176, %s178
      %p182 = scmp.eq.s32.totalorder %s16, 0
      %p183 = por %p181, %p182
      %p184 = scmp.ne.s32.totalorder %s176, %s178
      %p185 = scmp.eq.s32.totalorder %s21, 1
      %p186 = por %p184, %p185
      %p187 = scmp.ne.s32.totalorder %s178, %s179
      %p188 = scmp.eq.s32.totalorder %s21, 0
      %p189 = por %p187, %p188
      %p190 = scmp.ne.s32.totalorder %s178, %s179
      %p191 = scmp.eq.s32.totalorder %s22, 1
      %p192 = por %p190, %p191
      %p194 = scmp.ne.s32.totalorder %s179, %s193
      %p195 = scmp.eq.s32.totalorder %s22, 0
      %p196 = por %p194, %p195
      %s197 = ssub.s32 %s23, %s35
      %s198 = ssub.s32 %s24, %s31
      %s199 = sor.u32 %s197, %s198
      %p200 = scmp.eq.s32.totalorder %s199, 0
      %s202 = sadd.s32 %s201, 1
      %s203 = scalar_select %p200, %s201, %s202
      %p206 = pneg %p200
      %p207 = scmp.eq.s32.totalorder %s16, 1
      %p208 = por %p206, %p207
      %p209 = scmp.ne.s32.totalorder %s201, %s204
      %p210 = scmp.eq.s32.totalorder %s16, 0
      %p211 = por %p209, %p210
      %p212 = scmp.ne.s32.totalorder %s201, %s204
      %p213 = scmp.eq.s32.totalorder %s21, 1
      %p214 = por %p212, %p213
      %p215 = scmp.ne.s32.totalorder %s204, %s205
      %p216 = scmp.eq.s32.totalorder %s21, 0
      %p217 = por %p215, %p216
      %p218 = scmp.ne.s32.totalorder %s204, %s205
      %p219 = scmp.eq.s32.totalorder %s22, 1
      %p220 = por %p218, %p219
      %p222 = scmp.ne.s32.totalorder %s205, %s221
      %p223 = scmp.eq.s32.totalorder %s22, 0
      %p224 = por %p222, %p223
      %p225 = scmp.le.s32.totalorder 1, %s16
      %p226 = scmp.lt.s32.totalorder %s16, 3
      %p227 = pnand %p225, %p226
      %p228 = pneg %p227
      // Predicated region
      $region9: #{tpu_custom_call.1} parent=5 // pred_check
        _
      $region10: #{tpu_custom_call.1} parent=5 // pred_check_branch
        %230 = sbr.rel (%p227) target = $region12
      $region11: #{tpu_custom_call.1} parent=5 // pred_region
        %s231 = ssub.s32 %s16, 1
        // Predicated region
        $region13: #{tpu_custom_call.1} parent=11 // pred_check
          %p232 = pneg %p105
        $region14: #{tpu_custom_call.1} parent=11 // pred_check_branch
          %234 = sbr.rel (%p232) target = $region16
        $region15: #{tpu_custom_call.1} parent=11 // pred_region
          _
        $region16: #{tpu_custom_call.1} parent=11 // pred_fallthru
          _
        // Predicated region
        $region17: #{tpu_custom_call.1} parent=11 // pred_check
          %p235 = pneg %p126
        $region18: #{tpu_custom_call.1} parent=11 // pred_check_branch
          %237 = sbr.rel (%p235) target = $region20
        $region19: #{tpu_custom_call.1} parent=11 // pred_region
          _
        $region20: #{tpu_custom_call.1} parent=11 // pred_fallthru
          _
        // Predicated region
        $region21: #{tpu_custom_call.1} parent=11 // pred_check
          %p238 = pneg %p147
        $region22: #{tpu_custom_call.1} parent=11 // pred_check_branch
          %240 = sbr.rel (%p238) target = $region24
        $region23: #{tpu_custom_call.1} parent=11 // pred_region
          _
        $region24: #{tpu_custom_call.1} parent=11 // pred_fallthru
          _
        // Predicated region
        $region25: #{tpu_custom_call.1} parent=11 // pred_check
          %p241 = pneg %p168
        $region26: #{tpu_custom_call.1} parent=11 // pred_check_branch
          %243 = sbr.rel (%p241) target = $region28
        $region27: #{tpu_custom_call.1} parent=11 // pred_region
          _
        $region28: #{tpu_custom_call.1} parent=11 // pred_fallthru
          _
        // Predicated region
        $region29: #{tpu_custom_call.1} parent=11 // pred_check
          %p244 = pneg %p189
        $region30: #{tpu_custom_call.1} parent=11 // pred_check_branch
          %246 = sbr.rel (%p244) target = $region32
        $region31: #{tpu_custom_call.1} parent=11 // pred_region
          _
        $region32: #{tpu_custom_call.1} parent=11 // pred_fallthru
          _
      $region12: #{tpu_custom_call.1} parent=5 // pred_fallthru
        _
      %p247 = scmp.lt.s32.totalorder %s16, 2
      // Predicated region
      $region33: #{tpu_custom_call.1} parent=5 // pred_check
        %p248 = pneg %p247
      $region34: #{tpu_custom_call.1} parent=5 // pred_check_branch
        %250 = sbr.rel (%p248) target = $region36
      $region35: #{tpu_custom_call.1} parent=5 // pred_region
        // Predicated region
        $region37: #{tpu_custom_call.1} parent=35 // pred_check
          %p251 = pneg %p50
        $region38: #{tpu_custom_call.1} parent=35 // pred_check_branch
          %253 = sbr.rel (%p251) target = $region40
        $region39: #{tpu_custom_call.1} parent=35 // pred_region
          %s254 = smul.u32 2, %s24
          %p255 = scmp.lt.s32.totalorder %s23, 1
          %s256 = scalar_select %p255, %s23, 1
          %p257 = scmp.lt.s32.totalorder %s254, 1
          %s258 = scalar_select %p257, %s254, 1
          %s259 = smul.addr %s256, 2
          %s260 = sadd.s32 %s258, %s259
          %s261 = smul.addr %s260, 8
          %s262 = scalar_lea.vmem %s0, %s261
          %s263 = smul.u32 2, %s24
        $region40: #{tpu_custom_call.1} parent=35 // pred_fallthru
          _
        // Predicated region
        $region41: #{tpu_custom_call.1} parent=35 // pred_check
          %p264 = pneg %p78
        $region42: #{tpu_custom_call.1} parent=35 // pred_check_branch
          %266 = sbr.rel (%p264) target = $region44
        $region43: #{tpu_custom_call.1} parent=35 // pred_region
          %s267 = smul.u32 2, %s24
          %p268 = scmp.lt.s32.totalorder %s23, 1
          %s269 = scalar_select %p268, %s23, 1
          %p270 = scmp.lt.s32.totalorder %s267, 1
          %s271 = scalar_select %p270, %s267, 1
          %s272 = smul.addr %s269, 2
          %s273 = sadd.s32 %s271, %s272
          %s274 = smul.addr %s273, 8
          %s275 = scalar_lea.vmem %s1, %s274
          %s276 = smul.u32 2, %s24
        $region44: #{tpu_custom_call.1} parent=35 // pred_fallthru
          _
      $region36: #{tpu_custom_call.1} parent=5 // pred_fallthru
        _
      %p277 = scmp.le.s32.totalorder 1, %s16
      %p278 = scmp.lt.s32.totalorder %s16, 3
      %p279 = pnand %p277, %p278
      %p280 = pneg %p279
      // Predicated region
      $region45: #{tpu_custom_call.1} parent=5 // pred_check
        _
      $region46: #{tpu_custom_call.1} parent=5 // pred_check_branch
        %282 = sbr.rel (%p279) target = $region48
      $region47: #{tpu_custom_call.1} parent=5 // pred_region
        %s283 = ssub.s32 %s16, 1
        %s284 = smul.u32 2, %s26
        %p285 = scmp.lt.s32.totalorder %s25, 1
        %s286 = scalar_select %p285, %s25, 1
        %p287 = scmp.lt.s32.totalorder %s284, 1
        %s288 = scalar_select %p287, %s284, 1
        %s289 = smul.addr %s286, 2
        %s290 = sadd.s32 %s288, %s289
        %s291 = smul.addr %s290, 8
        %s292 = scalar_lea.vmem %s0, %s291
        %p293 = pneg %p56
        %p294 = pneg %p53
        %s295 = smul.u32 2, %s26
        %p296 = scmp.lt.s32.totalorder %s25, 1
        %s297 = scalar_select %p296, %s25, 1
        %p298 = scmp.lt.s32.totalorder %s295, 1
        %s299 = scalar_select %p298, %s295, 1
        %s300 = smul.addr %s297, 2
        %s301 = sadd.s32 %s299, %s300
        %s302 = smul.addr %s301, 8
        %s303 = scalar_lea.vmem %s1, %s302
        %p304 = pneg %p84
        %p305 = pneg %p81
        %p306 = pneg %p105
        %p307 = pneg %p102
        %p308 = pneg %p126
        %p309 = pneg %p123
        %p310 = pneg %p147
        %p311 = pneg %p144
        %p312 = pneg %p168
        %p313 = pneg %p165
        %p314 = pneg %p189
        %p315 = pneg %p186
        %p316 = pneg %p217
        %p317 = pneg %p214
        %s318 = sand.u32 %s204, 1
        %s319 = scalar_lea.sflag [#allocation3], %s318
        %s320 = sand.u32 %s204, 1
        %s321 = smul.addr %s320, 16
        %s322 = scalar_lea.vmem [#allocation2], %s321
        %s323 = smul.u32 2, %s26
        %p324 = scmp.lt.s32.totalorder %s25, 1
        %s325 = scalar_select %p324, %s25, 1
        %p326 = scmp.lt.s32.totalorder %s323, 1
        %s327 = scalar_select %p326, %s323, 1
        %s328 = smul.addr %s325, 2
        %s329 = sadd.s32 %s327, %s328
        %s330 = smul.addr %s329, 8
        %s331 = scalar_lea.vmem %s0, %s330
        %s332 = smul.u32 2, %s26
        %s333 = smul.u32 2, %s26
        %p334 = scmp.lt.s32.totalorder %s25, 1
        %s335 = scalar_select %p334, %s25, 1
        %p336 = scmp.lt.s32.totalorder %s333, 1
        %s337 = scalar_select %p336, %s333, 1
        %s338 = smul.addr %s335, 2
        %s339 = sadd.s32 %s337, %s338
        %s340 = smul.addr %s339, 8
        %s341 = scalar_lea.vmem %s1, %s340
        %s342 = smul.u32 2, %s26
        %s343 = smul.u32 2, %s26
        %s344 = smul.u32 %s26, 16
        %v345 = vld [vmem:[%s331] sm:$0xff]
        %v346 = vld [vmem:[%s331 + $0x8] sm:$0xff]
        %v347 = vlaneseq
        %v348 = vand.u32 %v347, 127
        %349 = vset.pattern.permute.xlu0 0
        %350 = vperm.xlu0 %349, %v345
        %v351 = vpop.permute.xlu0 %350
        %352 = vset.pattern.permute.xlu0 0
        %353 = vperm.xlu0 %352, %v346
        %v354 = vpop.permute.xlu0 %353
        %vm355 = vcmp.eq.s32.totalorder %v348, %v351
        %vm356 = vcmp.eq.s32.totalorder %v348, %v354
        %v357 = vsel %vm355, 1, 0
        %v358 = vsel %vm356, 1, 0
        %v359 = vcvt.s32.f32 %v357
        %v360 = vcvt.s32.f32 %v358
        %v361 = vld [vmem:[%s2] sm:$0xff]
        %v362 = vld [vmem:[%s2 + $0x8] sm:$0xff]
        %v363 = vld [vmem:[%s2 + $0x10] sm:$0xff]
        %v364 = vld [vmem:[%s2 + $0x18] sm:$0xff]
        %v365 = vld [vmem:[%s2 + $0x20] sm:$0xff]
        %v366 = vld [vmem:[%s2 + $0x28] sm:$0xff]
        %v367 = vld [vmem:[%s2 + $0x30] sm:$0xff]
        %v368 = vld [vmem:[%s2 + $0x38] sm:$0xff]
        %s369 = scalar_lea.vmem %s3, %s344
        %v370 = vld [vmem:[%s369] sm:$0xff]
        %v371 = vld [vmem:[%s369 + $0x8] sm:$0xff]
        %vm372 = vcmask 523264
        %v374 = vsel %vm372, %v359, 0
        %v377 = vsel %vm372, %v360, 0
        %379 = vmatprep.subr.mxu0 0.0
        %380 = vmatpush1.msra.mxu0 %v361
        %381 = vmatprep.subr.mxu0 0.0
        %382 = vmatpush1.msra.mxu0 %v362
        %383 = vmatprep.subr.mxu0 0.0
        %384 = vmatpush1.msra.mxu0 %v363
        %385 = vmatprep.subr.mxu0 0.0
        %386 = vmatpush1.msra.mxu0 %v364
        %387 = vmatprep.subr.mxu0 0.0
        %388 = vmatpush1.msra.mxu0 %v365
        %389 = vmatprep.subr.mxu0 0.0
        %390 = vmatpush1.msra.mxu0 %v366
        %391 = vmatprep.subr.mxu0 0.0
        %392 = vmatpush1.msra.mxu0 %v367
        %393 = vmatprep.subr.mxu0 0.0
        %394 = vmatpush1.msra.mxu0 %v368
        %395 = vmatprep.subr.mxu0 0.0
        %396 = vmatpush1.msra.mxu0 0.0
        %397 = vmatprep.subr.mxu0 0.0
        %398 = vmatpush1.msra.mxu0 0.0
        %399 = vmatprep.subr.mxu0 0.0
        %400 = vmatpush1.msra.mxu0 0.0
        %401 = vmatprep.subr.mxu0 0.0
        %402 = vmatpush1.msra.mxu0 0.0
        %403 = vmatprep.subr.mxu0 0.0
        %404 = vmatpush1.msra.mxu0 0.0
        %405 = vmatprep.subr.mxu0 0.0
        %406 = vmatpush1.msra.mxu0 0.0
        %407 = vmatprep.subr.mxu0 0.0
        %408 = vmatpush1.msra.mxu0 0.0
        %409 = vmatprep.subr.mxu0 0.0
        %410 = vmatpush1.msra.mxu0 0.0
        %411 = vmatprep.subr.mxu0 0.0
        %412 = vmatpush1.msra.mxu0 0.0
        %413 = vmatprep.subr.mxu0 0.0
        %414 = vmatpush1.msra.mxu0 0.0
        %415 = vmatprep.subr.mxu0 0.0
        %416 = vmatpush1.msra.mxu0 0.0
        %417 = vmatprep.subr.mxu0 0.0
        %418 = vmatpush1.msra.mxu0 0.0
        %419 = vmatprep.subr.mxu0 0.0
        %420 = vmatpush1.msra.mxu0 0.0
        %421 = vmatprep.subr.mxu0 0.0
        %422 = vmatpush1.msra.mxu0 0.0
        %423 = vmatprep.subr.mxu0 0.0
        %424 = vmatpush1.msra.mxu0 0.0
        %425 = vmatprep.subr.mxu0 0.0
        %426 = vmatpush1.msra.mxu0 0.0
        %427 = vmatprep.subr.mxu0 0.0
        %428 = vmatpush1.msra.mxu0 0.0
        %429 = vmatprep.subr.mxu0 0.0
        %430 = vmatpush1.msra.mxu0 0.0
        %431 = vmatprep.subr.mxu0 0.0
        %432 = vmatpush1.msra.mxu0 0.0
        %433 = vmatprep.subr.mxu0 0.0
        %434 = vmatpush1.msra.mxu0 0.0
        %435 = vmatprep.subr.mxu0 0.0
        %436 = vmatpush1.msra.mxu0 0.0
        %437 = vmatprep.subr.mxu0 0.0
        %438 = vmatpush1.msra.mxu0 0.0
        %439 = vmatprep.subr.mxu0 0.0
        %440 = vmatpush1.msra.mxu0 0.0
        %441 = vmatprep.subr.mxu0 0.0
        %442 = vmatpush1.msra.mxu0 0.0
        %443 = vmatprep.mubr.f32.mxu0 0.0
        %444 = vmatmul.mubr.f32.gmra.mrb[0].mxu0 %v374
        %v445 = vpop.f32.mrb[0].mxu0
        %v446 = vadd.f32 %v370, %v445
        %v447 = vpop.f32.mrb[0].mxu0
        %448 = vmatprep.mubr.f32.mxu0 0.0
        %449 = vmatmul.mubr.f32.gmra.mrb[0].mxu0 %v377
        %v450 = vpop.f32.mrb[0].mxu0
        %v451 = vadd.f32 %v371, %v450
        %v452 = vpop.f32.mrb[0].mxu0
        %453 = vdwg.mxu0
        %v454 = vld [vmem:[%s341] sm:$0xff]
        %v455 = vld [vmem:[%s341 + $0x8] sm:$0xff]
        %v456 = vld [vmem:[%s4] sm:$0x1]
        %vm457 = vcmp.eq.s32.totalorder %v454, 1
        %vm458 = vcmp.eq.s32.totalorder %v455, 1
        %v459 = vld [vmem:[%s4 + $0x1] sm:$0x1]
        %v460 = vsel %vm457, 1, 0
        %v461 = vsel %vm458, 1, 0
        %462 = vset.pattern.permute.xlu0 0
        %463 = vperm.xlu0 %462, %v460
        %v464 = vpop.permute.xlu0 %463
        %465 = vset.pattern.permute.xlu0 0
        %466 = vperm.xlu0 %465, %v461
        %v467 = vpop.permute.xlu0 %466
        %vm468 = vcmp.eq.s32.totalorder %v464, 1
        %vm469 = vcmp.eq.s32.totalorder %v467, 1
        %v470 = vlaneseq
        %v471 = vshrl.u32 %v470, 7
        %v472 = vsub.s32 0, %v471
        %v473 = vrot.slane %v459, %v472
        %v474 = vlaneseq
        %v475 = vshrl.u32 %v474, 7
        %v476 = vsub.s32 0, %v475
        %v477 = vrot.slane %v456, %v476
        %v478 = vsel %vm468, %v473, %v477
        %v479 = vsel %vm469, %v473, %v477
        %v480 = vadd.f32 %v446, %v478
        %v481 = vadd.f32 %v451, %v479
        %vm482 = vcmask 261120
        %v483 = vsel %vm482, %v480, 0.0
        %484 = vadd.xlane.f32.xlu0 %v483
        %v485 = vpop.xlane.xlu0 %484
        %v486 = vsel %vm482, %v481, 0.0
        %487 = vadd.xlane.f32.xlu0 %v486
        %v488 = vpop.xlane.xlu0 %487
        %v489 = vrcp.pop 32.0
        %v490 = vmul.f32 %v485, %v489
        %v491 = vmul.f32 %v488, %v489
        %v492 = vsub.f32 %v480, %v490
        %v493 = vsub.f32 %v481, %v491
        %v494 = vmul.f32 %v492, %v492
        %v495 = vmul.f32 %v493, %v493
        %v496 = vsel %vm482, %v494, 0.0
        %497 = vadd.xlane.f32.xlu0 %v496
        %v498 = vpop.xlane.xlu0 %497
        %v499 = vsel %vm482, %v495, 0.0
        %500 = vadd.xlane.f32.xlu0 %v499
        %v501 = vpop.xlane.xlu0 %500
        %v502 = vmul.f32 %v498, %v489
        %v503 = vmul.f32 %v501, %v489
        %v504 = vadd.f32 %v502, 1e-12
        %v505 = vadd.f32 %v503, 1e-12
        %v506 = vrsqrt.pop %v504
        %v507 = vrsqrt.pop %v505
        %v508 = vld [vmem:[%s5] sm:$0x1]
        %v510 = vlaneseq
        %v511 = vshrl.u32 %v510, 7
        %v512 = vsub.s32 0, %v511
        %v513 = vrot.slane %v508, %v512
        %v515 = vmul.f32 %v506, %v513
        %v516 = vmul.f32 %v507, %v513
        %v517 = vmul.f32 %v492, %v515
        %v518 = vmul.f32 %v493, %v516
        %v519 = vld [vmem:[%s6] sm:$0x1]
        %v521 = vlaneseq
        %v522 = vshrl.u32 %v521, 7
        %v523 = vsub.s32 0, %v522
        %v524 = vrot.slane %v519, %v523
        %v526 = vadd.f32 %v517, %v524
        %v527 = vadd.f32 %v518, %v524
        %528 = vst.msk [vmem:[%s322] sm:$0xff] %vm482, %v526
        %529 = vst.msk [vmem:[%s322 + $0x8] sm:$0xff] %vm482, %v527
        %s530 = sand.u32 %s204, 1
        %s531 = scalar_lea.sflag [#allocation3], %s530
        %s532 = sand.u32 %s204, 1
        %s533 = smul.addr %s532, 16
        %s534 = scalar_lea.vmem [#allocation2], %s533
        // Predicated region
        $region49: #{tpu_custom_call.1} parent=47 // pred_check
          %p535 = pneg %p214
        $region50: #{tpu_custom_call.1} parent=47 // pred_check_branch
          %537 = sbr.rel (%p535) target = $region52
        $region51: #{tpu_custom_call.1} parent=47 // pred_region
          %s538 = smul.u32 2, %s26
          %s540 = ssub.s32 256, 256
          %541 = vsyncadd %s531, %s540
          %s542 = smul.addr %s25, 2
          %s543 = sadd.s32 %s538, %s542
          %s544 = smul.addr %s543, 128
          %s545 = scalar_lea.hbm %s7, %s544
          %s546 = sshll.u32 %s534, 4
          %s547 = int_to_ptr.vmem [resolvable:$true] %s546
          %552 = dma.vmem_to_hbm [thread:$0]  %s547, 256, %s545, %s531, 128, 128, 8
        $region52: #{tpu_custom_call.1} parent=47 // pred_fallthru
          _
      $region48: #{tpu_custom_call.1} parent=5 // pred_fallthru
        _
      %p553 = scmp.le.s32.totalorder 2, %s16
      // Predicated region
      $region53: #{tpu_custom_call.1} parent=5 // pred_check
        %p554 = pneg %p553
      $region54: #{tpu_custom_call.1} parent=5 // pred_check_branch
        %556 = sbr.rel (%p554) target = $region56
      $region55: #{tpu_custom_call.1} parent=5 // pred_region
        %s557 = ssub.s32 %s16, 2
        // Predicated region
        $region57: #{tpu_custom_call.1} parent=55 // pred_check
          %p558 = pneg %p220
        $region58: #{tpu_custom_call.1} parent=55 // pred_check_branch
          %560 = sbr.rel (%p558) target = $region60
        $region59: #{tpu_custom_call.1} parent=55 // pred_region
          %s561 = sand.u32 %s205, 1
          %s562 = scalar_lea.sflag [#allocation3], %s561
          %s563 = sand.u32 %s205, 1
          %s564 = smul.addr %s563, 16
          %s565 = scalar_lea.vmem [#allocation2], %s564
          %566 = dma.done %s562, 256
        $region60: #{tpu_custom_call.1} parent=55 // pred_fallthru
          _
      $region56: #{tpu_custom_call.1} parent=5 // pred_fallthru
        _
    $region6: #{tpu_custom_call.1} parent=1 // loop_footer
      %s20 = sadd.s32 1, %s16
    $region7: #{tpu_custom_call.1} parent=1 // loop_footer_branch
      %15 = sbr.rel target = $region3
    $region8: #{tpu_custom_call.1} parent=1 // loop_exit
      _
    %567 = vsyncpa [#allocation3], 1
    %s568 = scalar_lea.sflag [#allocation3], 1
    %569 = vsyncpa %s568, 1

</llo_original>
